<compile_context>
chip_gen: v7x
topology: tpu7x:2x2x1
jax: 0.10.0
libtpu: 0.0.40
codegen_flags: <defaults>
</compile_context>

<pallas_src>
import functools
import inspect

import jax
import jax.numpy as jnp
import numpy as np
from jax.experimental import pallas as pl
from jax.experimental.pallas import tpu as pltpu

_LANE = 128
_SUBLANE = 8


def _round_up(n, m):
    return (n + m - 1) // m * m


def _supports_pipeline_mode():
    try:
        return hasattr(pl, "Buffered") and (
            "pipeline_mode" in inspect.signature(pl.BlockSpec).parameters)
    except (TypeError, ValueError):
        return False


_HAS_PIPELINE_MODE = _supports_pipeline_mode()


# --------------------------------------------------------------------------- #
# Kernel
# --------------------------------------------------------------------------- #
def _rnn_msg_forward_kernel(x_ref, h_ref,
                            w1_ref, b1_ref,
                            wih_ref, bih_ref,
                            whh_ref, bhh_ref,
                            out_ref, *, hp):
    x = x_ref[...]
    h = h_ref[...]

    # fc1 + ReLU  (MXU matmul, f32 accumulate)
    a = jnp.dot(x, w1_ref[...], preferred_element_type=jnp.float32) + b1_ref[...]
    a = jnp.maximum(a, 0.0)

    # All three gates in two MXU passes (N = 3*HP); no concat temporaries.
    gi = jnp.dot(a, wih_ref[...], preferred_element_type=jnp.float32) + bih_ref[...]
    gh = jnp.dot(h, whh_ref[...], preferred_element_type=jnp.float32) + bhh_ref[...]

    # sigmoid(v) == 0.5*(tanh(0.5*v) + 1): one EUP op per gate, no exp+divide.
    r = 0.5 * (jnp.tanh(0.5 * (gi[:, :hp] + gh[:, :hp])) + 1.0)
    z = 0.5 * (jnp.tanh(0.5 * (gi[:, hp:2 * hp] + gh[:, hp:2 * hp])) + 1.0)
    n = jnp.tanh(gi[:, 2 * hp:] + r * gh[:, 2 * hp:])

    # (1 - z)*n + z*h  ==  n + z*(h - n): one fewer VPU multiply.
    out_ref[...] = (n + z * (h - n)).astype(out_ref.dtype)


# --------------------------------------------------------------------------- #
# Weight preparation: each gate padded to its own lane-aligned HP-wide block.
# --------------------------------------------------------------------------- #
def prepare_padded_params(params, *, lane=_LANE):
    """Pad fc1/GRU weights once (hoist out of the per-step path)."""
    H = params["w_hh"].shape[0]
    D = params["w1"].shape[0]
    hp = _round_up(H, lane)

    def pad_gate_cols(m, rows_out=None):
        # m: (R, 3H), gate order r|z|n  ->  (rows_out or R, 3*hp) with each
        # gate occupying its own lane-aligned hp-wide block (padding zeros).
        rows = m.shape[0]
        rows_out = rows if rows_out is None else rows_out
        out = jnp.zeros((rows_out, 3 * hp), m.dtype)
        for g in range(3):
            out = out.at[:rows, g * hp:g * hp + H].set(m[:, g * H:(g + 1) * H])
        return out

    w1 = jnp.zeros((D, hp), params["w1"].dtype).at[:, :H].set(params["w1"])
    b1 = jnp.zeros((1, hp), params["b1"].dtype).at[:, :H].set(params["b1"])
    w_ih = pad_gate_cols(params["w_ih"], rows_out=hp)   # (hp, 3hp)
    b_ih = pad_gate_cols(params["b_ih"])                # (1, 3hp)
    w_hh = pad_gate_cols(params["w_hh"], rows_out=hp)   # (hp, 3hp)
    b_hh = pad_gate_cols(params["b_hh"])                # (1, 3hp)

    # Padded lanes stay exactly zero across steps: gi = gh = 0 there, so
    # r = z = 0.5, n = 0, out = 0 + 0.5*(0 - 0) = 0.
    return {"H": H, "D": D, "hp": hp,
            "weights": (w1, b1, w_ih, b_ih, w_hh, b_hh)}


# --------------------------------------------------------------------------- #
# Batch tiling / packing helpers
# --------------------------------------------------------------------------- #
def _choose_tile_b(B, max_tile_b):
    """Largest tile (multiple of 8, <= max_tile_b) keeping padded rows <~12.5%."""
    b8 = _round_up(max(B, 1), _SUBLANE)
    cap = max(_SUBLANE, min(_round_up(max_tile_b, _SUBLANE), b8))
    best = _SUBLANE
    for t in range(_SUBLANE, cap + 1, _SUBLANE):
        pad = _round_up(b8, t) - b8
        if pad == 0 or pad * 8 <= b8:
            best = t
    return best


def pack_rows(x, bp):
    """Pad rows B -> Bp (no copy when already aligned)."""
    b = x.shape[0]
    if b == bp:
        return x
    return jnp.zeros((bp,) + x.shape[1:], x.dtype).at[:b].set(x)


def pack_hidden(hidden, bp, hp):
    """[batch, n_agents, H] -> padded (Bp, HP) f32 layout (done at seq start)."""
    H = hidden.shape[-1]
    h = hidden.reshape(-1, H).astype(jnp.float32)
    b = h.shape[0]
    if b == bp and H == hp:
        return h
    return jnp.zeros((bp, hp), jnp.float32).at[:b, :H].set(h)


def unpack_hidden(h_p, b, H, n_agents):
    return h_p[:b, :H].reshape(-1, n_agents, H)


# --------------------------------------------------------------------------- #
# Core call: operates directly on the persistent padded layout.
# --------------------------------------------------------------------------- #
def rnn_msg_forward_padded(x_p, h_p, padded, *, tile_b):
    """One GRU step on pre-padded operands.

    x_p: (Bp, D), h_p: (Bp, HP) with padded lanes/rows zero, Bp % tile_b == 0.
    Returns the new hidden state in the same padded layout (the h_p buffer is
    aliased), so it feeds straight into the next step without HBM repacking.
    """
    bp, D = x_p.shape
    hp = padded["hp"]
    weights = padded["weights"]
    dt = x_p.dtype
    assert bp % tile_b == 0 and h_p.shape == (bp, hp)

    row_spec = lambda cols: pl.BlockSpec((tile_b, cols), lambda i: (i, 0))
    if _HAS_PIPELINE_MODE:
        # Resident weights: single buffer (matters at large H on v7x's 64 MiB VMEM).
        wspec = lambda arr: pl.BlockSpec(arr.shape, lambda i: (0, 0),
                                         pipeline_mode=pl.Buffered(1))
        w_buf = 1
    else:
        wspec = lambda arr: pl.BlockSpec(arr.shape, lambda i: (0, 0))
        w_buf = 2

    # VMEM budget: weights (x buffer count) + double-buffered x/h/out tiles
    # + in-kernel temporaries (a, gi, gh, r, z, n) + slack; cap at 48 MiB to
    # leave Mosaic internal-scratch headroom on v7x.
    itemsize = jnp.dtype(dt).itemsize
    w_bytes = w_buf * sum(int(np.prod(w.shape)) for w in weights) * itemsize
    io_bytes = 2 * tile_b * (D + 2 * hp) * itemsize
    tmp_bytes = 10 * tile_b * hp * itemsize
    vmem_limit = int(min(48 << 20,
                         max(8 << 20, w_bytes + io_bytes + tmp_bytes + (2 << 20))))

    return pl.pallas_call(
        functools.partial(_rnn_msg_forward_kernel, hp=hp),
        out_shape=jax.ShapeDtypeStruct((bp, hp), dt),
        grid=(bp // tile_b,),
        in_specs=[row_spec(D), row_spec(hp)] + [wspec(w) for w in weights],
        out_specs=pl.BlockSpec((tile_b, hp), lambda i: (i, 0)),
        input_output_aliases={1: 0},      # reuse the hidden-state buffer for h_out
        compiler_params=pltpu.CompilerParams(
            dimension_semantics=("parallel",),
            vmem_limit_bytes=vmem_limit),
    )(x_p, h_p, *weights)


# --------------------------------------------------------------------------- #
# Convenience wrapper (single step, PyTorch-shaped in/out).
# --------------------------------------------------------------------------- #
def rnn_msg_forward(x, hidden, params_or_padded, *, n_agents, max_tile_b=512):
    """x: [B, input_dim], hidden: [batch, n_agents, H] -> [batch, n_agents, H]."""
    B, _ = x.shape
    padded = (params_or_padded if "weights" in params_or_padded
              else prepare_padded_params(params_or_padded))
    H, hp = padded["H"], padded["hp"]

    tile_b = _choose_tile_b(B, max_tile_b)
    bp = _round_up(B, tile_b)

    x_p = pack_rows(x.astype(jnp.float32), bp)
    h_p = pack_hidden(hidden, bp, hp)   # fresh padded copy (safe to alias/donate)
    h_out = rnn_msg_forward_padded(x_p, h_p, padded, tile_b=tile_b)
    return unpack_hidden(h_out, B, H, n_agents)


# --------------------------------------------------------------------------- #
# Reference + synthetic params
# --------------------------------------------------------------------------- #
def _reference_forward(x, hidden, params, *, n_agents):
    H = params["w_hh"].shape[0]
    h = hidden.reshape(-1, H)
    a = jax.nn.relu(x @ params["w1"] + params["b1"])
    gi = a @ params["w_ih"] + params["b_ih"]
    gh = h @ params["w_hh"] + params["b_hh"]
    i_r, i_z, i_n = gi[:, :H], gi[:, H:2 * H], gi[:, 2 * H:]
    h_r, h_z, h_n = gh[:, :H], gh[:, H:2 * H], gh[:, 2 * H:]
    r = jax.nn.sigmoid(i_r + h_r)
    z = jax.nn.sigmoid(i_z + h_z)
    n = jnp.tanh(i_n + r * h_n)
    return ((1.0 - z) * n + z * h).reshape(-1, n_agents, H)


def init_params(key, input_dim, hidden_dim):
    """Deterministic synthetic weights (PyTorch-style uniform fan-in init)."""
    ks = jax.random.split(key, 6)
    u = lambda k, shape, bound: jax.random.uniform(
        k, shape, jnp.float32, minval=-bound, maxval=bound)
    b1 = 1.0 / np.sqrt(input_dim)
    bh = 1.0 / np.sqrt(hidden_dim)
    return {
        # fc1: Linear(input_dim, H), stored as (in, out)
        "w1": u(ks[0], (input_dim, hidden_dim), b1),
        "b1": u(ks[1], (1, hidden_dim), b1),
        # GRUCell weights, stored transposed: (in, 3H) with gate order r|z|n
        "w_ih": u(ks[2], (hidden_dim, 3 * hidden_dim), bh),
        "b_ih": u(ks[3], (1, 3 * hidden_dim), bh),
        "w_hh": u(ks[4], (hidden_dim, 3 * hidden_dim), bh),
        "b_hh": u(ks[5], (1, 3 * hidden_dim), bh),
    }
    # TODO(synk): communicate/aggregate/q_without_communication, the dropout
    # RND heads and the running obs/int/ext normalization stats are not part
    # of forward() and are not implemented.


if __name__ == "__main__":
    batch_size = 2
    n_agents = 4
    input_dim = 16
    hidden_dim = 32

    key = jax.random.PRNGKey(0)
    k_x, k_h, k_p, k_seq = jax.random.split(key, 4)

    B = batch_size * n_agents
    x = jax.random.normal(k_x, (B, input_dim), jnp.float32)
    hidden = jax.random.normal(k_h, (batch_size, n_agents, hidden_dim), jnp.float32)
    params = init_params(k_p, input_dim, hidden_dim)
    padded = prepare_padded_params(params)   # weight padding hoisted out of the step

    # --- single step (PyTorch-shaped wrapper) vs reference ----------------- #
    h_out = rnn_msg_forward(x, hidden, padded, n_agents=n_agents)
    h_out = jax.block_until_ready(h_out)
    h_ref = _reference_forward(x, hidden, params, n_agents=n_agents)
    np.testing.assert_allclose(np.asarray(h_out), np.asarray(h_ref),
                               rtol=1e-5, atol=1e-5)
    assert h_out.shape == (batch_size, n_agents, hidden_dim)

    # --- multi-step recurrence with the hidden state kept resident in the --- #
    # --- padded (Bp, HP) layout (aliased buffer, no per-step HBM repacking) - #
    steps = 3
    xs = jax.random.normal(k_seq, (steps, B, input_dim), jnp.float32)
    tile_b = _choose_tile_b(B, 512)
    bp = _round_up(B, tile_b)
    h_p = pack_hidden(hidden, bp, padded["hp"])
    h_ref_seq = hidden
    for t in range(steps):
        x_p = pack_rows(xs[t], bp)
        h_p = rnn_msg_forward_padded(x_p, h_p, padded, tile_b=tile_b)
        h_ref_seq = _reference_forward(xs[t], h_ref_seq, params, n_agents=n_agents)
    h_seq = jax.block_until_ready(unpack_hidden(h_p, B, hidden_dim, n_agents))
    np.testing.assert_allclose(np.asarray(h_seq), np.asarray(h_ref_seq),
                               rtol=1e-4, atol=1e-5)

    print("KERNEL_OK")
</pallas_src>

<mosaic_0001>
module attributes {stable_mosaic.version = 11 : i64} {
  func.func @_rnn_msg_forward_kernel(%arg0: i32, %arg1: memref<8x16xf32, #tpu.memory_space<vmem>>, %arg2: memref<8x128xf32, #tpu.memory_space<vmem>>, %arg3: memref<16x128xf32, #tpu.memory_space<vmem>>, %arg4: memref<1x128xf32, #tpu.memory_space<vmem>>, %arg5: memref<128x384xf32, #tpu.memory_space<vmem>>, %arg6: memref<1x384xf32, #tpu.memory_space<vmem>>, %arg7: memref<128x384xf32, #tpu.memory_space<vmem>>, %arg8: memref<1x384xf32, #tpu.memory_space<vmem>>, %arg9: memref<8x128xf32, #tpu.memory_space<vmem>>) attributes {dimension_semantics = [#tpu.dimension_semantics<parallel>], iteration_bounds = array<i64: 1>, scalar_prefetch = 0 : i64, scratch_operands = 0 : i64, tpu.core_type = #tpu.core_type<tc>, window_params = [{transform_indices = @transform_0, window_bounds = array<i64: 8, 16>}, {transform_indices = @transform_1, window_bounds = array<i64: 8, 128>}, {pipeline_mode = #tpu.pipeline_mode<synchronous>, transform_indices = @transform_2, window_bounds = array<i64: 16, 128>}, {pipeline_mode = #tpu.pipeline_mode<synchronous>, transform_indices = @transform_3, window_bounds = array<i64: 1, 128>}, {pipeline_mode = #tpu.pipeline_mode<synchronous>, transform_indices = @transform_4, window_bounds = array<i64: 128, 384>}, {pipeline_mode = #tpu.pipeline_mode<synchronous>, transform_indices = @transform_5, window_bounds = array<i64: 1, 384>}, {pipeline_mode = #tpu.pipeline_mode<synchronous>, transform_indices = @transform_6, window_bounds = array<i64: 128, 384>}, {pipeline_mode = #tpu.pipeline_mode<synchronous>, transform_indices = @transform_7, window_bounds = array<i64: 1, 384>}, {transform_indices = @transform_8, window_bounds = array<i64: 8, 128>}]} {
    %c0 = arith.constant 0 : index
    %c0_0 = arith.constant 0 : index
    %0 = vector.load %arg1[%c0, %c0_0] : memref<8x16xf32, #tpu.memory_space<vmem>>, vector<8x16xf32>
    %c0_1 = arith.constant 0 : index
    %c0_2 = arith.constant 0 : index
    %1 = vector.load %arg2[%c0_1, %c0_2] : memref<8x128xf32, #tpu.memory_space<vmem>>, vector<8x128xf32>
    %c0_3 = arith.constant 0 : index
    %c0_4 = arith.constant 0 : index
    %2 = vector.load %arg3[%c0_3, %c0_4] : memref<16x128xf32, #tpu.memory_space<vmem>>, vector<16x128xf32>
    %cst = arith.constant dense<0.000000e+00> : vector<8x128xf32>
    %3 = tpu.matmul %0, %2, %cst {dimension_numbers = #tpu.dot_dimension_numbers<[1], [0], [0], [1], [0, 0, 1, 1], [], []>} : vector<8x16xf32>, vector<16x128xf32>, vector<8x128xf32> -> vector<8x128xf32>
    %c0_5 = arith.constant 0 : index
    %c0_6 = arith.constant 0 : index
    %4 = vector.load %arg4[%c0_5, %c0_6] : memref<1x128xf32, #tpu.memory_space<vmem>>, vector<1x128xf32>
    %5 = vector.broadcast %4 : vector<1x128xf32> to vector<8x128xf32>
    %6 = arith.addf %3, %5 : vector<8x128xf32>
    %cst_7 = arith.constant 0.000000e+00 : f32
    %7 = vector.broadcast %cst_7 : f32 to vector<8x128xf32>
    %8 = arith.maximumf %6, %7 : vector<8x128xf32>
    %c0_8 = arith.constant 0 : index
    %c0_9 = arith.constant 0 : index
    %9 = vector.load %arg5[%c0_8, %c0_9] : memref<128x384xf32, #tpu.memory_space<vmem>>, vector<128x384xf32>
    %cst_10 = arith.constant dense<0.000000e+00> : vector<8x384xf32>
    %10 = tpu.matmul %8, %9, %cst_10 {dimension_numbers = #tpu.dot_dimension_numbers<[1], [0], [0], [1], [0, 0, 1, 1], [], []>} : vector<8x128xf32>, vector<128x384xf32>, vector<8x384xf32> -> vector<8x384xf32>
    %c0_11 = arith.constant 0 : index
    %c0_12 = arith.constant 0 : index
    %11 = vector.load %arg6[%c0_11, %c0_12] : memref<1x384xf32, #tpu.memory_space<vmem>>, vector<1x384xf32>
    %12 = vector.broadcast %11 : vector<1x384xf32> to vector<8x384xf32>
    %13 = arith.addf %10, %12 : vector<8x384xf32>
    %c0_13 = arith.constant 0 : index
    %c0_14 = arith.constant 0 : index
    %14 = vector.load %arg7[%c0_13, %c0_14] : memref<128x384xf32, #tpu.memory_space<vmem>>, vector<128x384xf32>
    %cst_15 = arith.constant dense<0.000000e+00> : vector<8x384xf32>
    %15 = tpu.matmul %1, %14, %cst_15 {dimension_numbers = #tpu.dot_dimension_numbers<[1], [0], [0], [1], [0, 0, 1, 1], [], []>} : vector<8x128xf32>, vector<128x384xf32>, vector<8x384xf32> -> vector<8x384xf32>
    %c0_16 = arith.constant 0 : index
    %c0_17 = arith.constant 0 : index
    %16 = vector.load %arg8[%c0_16, %c0_17] : memref<1x384xf32, #tpu.memory_space<vmem>>, vector<1x384xf32>
    %17 = vector.broadcast %16 : vector<1x384xf32> to vector<8x384xf32>
    %18 = arith.addf %15, %17 : vector<8x384xf32>
    %19 = vector.extract_strided_slice %13 {offsets = [0, 0], sizes = [8, 128], strides = [1, 1]} : vector<8x384xf32> to vector<8x128xf32>
    %20 = vector.extract_strided_slice %18 {offsets = [0, 0], sizes = [8, 128], strides = [1, 1]} : vector<8x384xf32> to vector<8x128xf32>
    %21 = arith.addf %19, %20 : vector<8x128xf32>
    %cst_18 = arith.constant 5.000000e-01 : f32
    %22 = vector.broadcast %cst_18 : f32 to vector<8x128xf32>
    %23 = arith.mulf %22, %21 : vector<8x128xf32>
    %24 = math.tanh %23 : vector<8x128xf32>
    %cst_19 = arith.constant 1.000000e+00 : f32
    %25 = vector.broadcast %cst_19 : f32 to vector<8x128xf32>
    %26 = arith.addf %24, %25 : vector<8x128xf32>
    %cst_20 = arith.constant 5.000000e-01 : f32
    %27 = vector.broadcast %cst_20 : f32 to vector<8x128xf32>
    %28 = arith.mulf %27, %26 : vector<8x128xf32>
    %29 = vector.extract_strided_slice %13 {offsets = [0, 128], sizes = [8, 128], strides = [1, 1]} : vector<8x384xf32> to vector<8x128xf32>
    %30 = vector.extract_strided_slice %18 {offsets = [0, 128], sizes = [8, 128], strides = [1, 1]} : vector<8x384xf32> to vector<8x128xf32>
    %31 = arith.addf %29, %30 : vector<8x128xf32>
    %cst_21 = arith.constant 5.000000e-01 : f32
    %32 = vector.broadcast %cst_21 : f32 to vector<8x128xf32>
    %33 = arith.mulf %32, %31 : vector<8x128xf32>
    %34 = math.tanh %33 : vector<8x128xf32>
    %cst_22 = arith.constant 1.000000e+00 : f32
    %35 = vector.broadcast %cst_22 : f32 to vector<8x128xf32>
    %36 = arith.addf %34, %35 : vector<8x128xf32>
    %cst_23 = arith.constant 5.000000e-01 : f32
    %37 = vector.broadcast %cst_23 : f32 to vector<8x128xf32>
    %38 = arith.mulf %37, %36 : vector<8x128xf32>
    %39 = vector.extract_strided_slice %13 {offsets = [0, 256], sizes = [8, 128], strides = [1, 1]} : vector<8x384xf32> to vector<8x128xf32>
    %40 = vector.extract_strided_slice %18 {offsets = [0, 256], sizes = [8, 128], strides = [1, 1]} : vector<8x384xf32> to vector<8x128xf32>
    %41 = arith.mulf %28, %40 : vector<8x128xf32>
    %42 = arith.addf %39, %41 : vector<8x128xf32>
    %43 = math.tanh %42 : vector<8x128xf32>
    %44 = arith.subf %1, %43 : vector<8x128xf32>
    %45 = arith.mulf %38, %44 : vector<8x128xf32>
    %46 = arith.addf %43, %45 : vector<8x128xf32>
    %c0_24 = arith.constant 0 : index
    %c0_25 = arith.constant 0 : index
    %47 = vector.load %arg9[%c0_24, %c0_25] : memref<8x128xf32, #tpu.memory_space<vmem>>, vector<8x128xf32>
    tpu.vector_store %arg9[%c0_24, %c0_25], %46 {strides = array<i32>} : memref<8x128xf32, #tpu.memory_space<vmem>>, vector<8x128xf32>,
    return
  }
  func.func @transform_0(%arg0: i32) -> (i32, i32) {
    %c0_i32 = arith.constant 0 : i32
    %c0_i32_0 = arith.constant 0 : i32
    return %arg0, %c0_i32 : i32, i32
  }
  func.func @transform_1(%arg0: i32) -> (i32, i32) {
    %c0_i32 = arith.constant 0 : i32
    %c0_i32_0 = arith.constant 0 : i32
    return %arg0, %c0_i32 : i32, i32
  }
  func.func @transform_2(%arg0: i32) -> (i32, i32) {
    %c0_i32 = arith.constant 0 : i32
    %c0_i32_0 = arith.constant 0 : i32
    %c0_i32_1 = arith.constant 0 : i32
    return %c0_i32, %c0_i32_0 : i32, i32
  }
  func.func @transform_3(%arg0: i32) -> (i32, i32) {
    %c0_i32 = arith.constant 0 : i32
    %c0_i32_0 = arith.constant 0 : i32
    %c0_i32_1 = arith.constant 0 : i32
    return %c0_i32, %c0_i32_0 : i32, i32
  }
  func.func @transform_4(%arg0: i32) -> (i32, i32) {
    %c0_i32 = arith.constant 0 : i32
    %c0_i32_0 = arith.constant 0 : i32
    %c0_i32_1 = arith.constant 0 : i32
    return %c0_i32, %c0_i32_0 : i32, i32
  }
  func.func @transform_5(%arg0: i32) -> (i32, i32) {
    %c0_i32 = arith.constant 0 : i32
    %c0_i32_0 = arith.constant 0 : i32
    %c0_i32_1 = arith.constant 0 : i32
    return %c0_i32, %c0_i32_0 : i32, i32
  }
  func.func @transform_6(%arg0: i32) -> (i32, i32) {
    %c0_i32 = arith.constant 0 : i32
    %c0_i32_0 = arith.constant 0 : i32
    %c0_i32_1 = arith.constant 0 : i32
    return %c0_i32, %c0_i32_0 : i32, i32
  }
  func.func @transform_7(%arg0: i32) -> (i32, i32) {
    %c0_i32 = arith.constant 0 : i32
    %c0_i32_0 = arith.constant 0 : i32
    %c0_i32_1 = arith.constant 0 : i32
    return %c0_i32, %c0_i32_0 : i32, i32
  }
  func.func @transform_8(%arg0: i32) -> (i32, i32) {
    %c0_i32 = arith.constant 0 : i32
    %c0_i32_0 = arith.constant 0 : i32
    return %arg0, %c0_i32 : i32, i32
  }
}

</mosaic_0001>

<llo_original>
// kernel: tpu_custom_call.1
$region0: #{tpu_custom_call.1}
  #allocation0 [shape = 'u32[]', space=smem, size = 0x4, offset = 0x4, fixed_abs, tag = 'smem constant byte address 0x4 - core index']
  #allocation1 [shape = 'u32[144,128]{1,0:T(1,128)}', space=vmem, size = 0x12000, scoped, tag = 'internal scratch']
  %s0 = inlined_call_operand.vmem [shape: f32[8,16], index: 0, kind: input, shape index: {}]
  %s1 = inlined_call_operand.hbm [shape: f32[8,128], index: 1, kind: input, shape index: {}, may-alias: {1,8}]
  %s2 = inlined_call_operand.vmem [shape: f32[16,128], index: 2, kind: input, shape index: {}]
  %s3 = inlined_call_operand.vmem [shape: f32[1,128], index: 3, kind: input, shape index: {}]
  %s4 = inlined_call_operand.hbm [shape: f32[128,384], index: 4, kind: input, shape index: {}]
  %s5 = inlined_call_operand.hbm [shape: f32[1,384], index: 5, kind: input, shape index: {}]
  %s6 = inlined_call_operand.hbm [shape: f32[128,384], index: 6, kind: input, shape index: {}]
  %s7 = inlined_call_operand.hbm [shape: f32[1,384], index: 7, kind: input, shape index: {}]
  %s8 = inlined_call_operand.hbm [shape: f32[8,128], index: 8, kind: output, shape index: {}, may-alias: {1,8}]
  %s9 = sld [smem:[#allocation0]]
  $region62: #{tpu_custom_call.1} parent=0
    _
  %s11 = ssub.s32 1, %s9
  %s12 = scalar_select 0, %s11, %s9
  $region1: #{tpu_custom_call.1} parent=0
    #allocation2 [shape = 'u8[4096]{0}', space=vmem, size = 0x1000, scoped, tag = 'input window, operand 1, single buffered']
    #allocation3 [shape = 's32[1]{0}', space=sflag, size = 0x4, scoped, tag = 'scoped memory for tpu_custom_call.1']
    #allocation4 [shape = 's32[1]{0}', space=sflag, size = 0x4, scoped, tag = 'scoped memory for tpu_custom_call.1']
    #allocation5 [shape = 'u8[196608]{0}', space=vmem, size = 0x30000, scoped, tag = 'input window, operand 4, single buffered']
    #allocation6 [shape = 's32[1]{0}', space=sflag, size = 0x4, scoped, tag = 'scoped memory for tpu_custom_call.1']
    #allocation7 [shape = 'u8[1536]{0}', space=vmem, size = 0x800, scoped, tag = 'input window, operand 5, single buffered']
    #allocation8 [shape = 'u8[196608]{0}', space=vmem, size = 0x30000, scoped, tag = 'input window, operand 6, single buffered']
    #allocation9 [shape = 's32[1]{0}', space=sflag, size = 0x4, scoped, tag = 'scoped memory for tpu_custom_call.1']
    #allocation10 [shape = 'u8[1536]{0}', space=vmem, size = 0x800, scoped, tag = 'input window, operand 7, single buffered']
    #allocation11 [shape = 'u8[4096]{0}', space=vmem, size = 0x1000, scoped, tag = 'output window, operand 0, single buffered']
    %13 = vsyncpa [#allocation3], 0
    %14 = vsyncpa [#allocation6], 0
    %15 = vsyncpa [#allocation9], 0
    %16 = vsyncpa [#allocation4], 0
    // Predicated region
    $region2: #{tpu_custom_call.1} parent=1 // pred_check
      _
    $region3: #{tpu_custom_call.1} parent=1 // pred_check_branch
      %18 = sbr.rel (0) target = $region5
    $region4: #{tpu_custom_call.1} parent=1 // pred_region
      _
    $region5: #{tpu_custom_call.1} parent=1 // pred_fallthru
      _
    // Predicated region
    $region6: #{tpu_custom_call.1} parent=1 // pred_check
      _
    $region7: #{tpu_custom_call.1} parent=1 // pred_check_branch
      %20 = sbr.rel (0) target = $region9
    $region8: #{tpu_custom_call.1} parent=1 // pred_region
      %s22 = ssub.s32 128, 128
      %23 = vsyncadd [#allocation3], %s22
      %s25 = sshll.u32 [#allocation2], 4
      %s26 = int_to_ptr.vmem [resolvable:$true] %s25
      %28 = dma.hbm_to_vmem [thread:$0]  %s1, 128, %s26, [#allocation3]
    $region9: #{tpu_custom_call.1} parent=1 // pred_fallthru
      _
    // Predicated region
    $region10: #{tpu_custom_call.1} parent=1 // pred_check
      _
    $region11: #{tpu_custom_call.1} parent=1 // pred_check_branch
      %30 = sbr.rel (0) target = $region13
    $region12: #{tpu_custom_call.1} parent=1 // pred_region
      _
    $region13: #{tpu_custom_call.1} parent=1 // pred_fallthru
      _
    // Predicated region
    $region14: #{tpu_custom_call.1} parent=1 // pred_check
      _
    $region15: #{tpu_custom_call.1} parent=1 // pred_check_branch
      %32 = sbr.rel (0) target = $region17
    $region16: #{tpu_custom_call.1} parent=1 // pred_region
      _
    $region17: #{tpu_custom_call.1} parent=1 // pred_fallthru
      _
    // Predicated region
    $region18: #{tpu_custom_call.1} parent=1 // pred_check
      _
    $region19: #{tpu_custom_call.1} parent=1 // pred_check_branch
      %34 = sbr.rel (0) target = $region21
    $region20: #{tpu_custom_call.1} parent=1 // pred_region
      %s36 = ssub.s32 6144, 6144
      %37 = vsyncadd [#allocation6], %s36
      %s38 = sshll.u32 [#allocation5], 4
      %s39 = int_to_ptr.vmem [resolvable:$true] %s38
      %44 = dma.hbm_to_vmem [thread:$0]  %s4, 6144, %s39, [#allocation6], 384, 384, 24
    $region21: #{tpu_custom_call.1} parent=1 // pred_fallthru
      _
    // Predicated region
    $region22: #{tpu_custom_call.1} parent=1 // pred_check
      _
    $region23: #{tpu_custom_call.1} parent=1 // pred_check_branch
      %46 = sbr.rel (0) target = $region25
    $region24: #{tpu_custom_call.1} parent=1 // pred_region
      %s48 = ssub.s32 48, 48
      %49 = vsyncadd [#allocation6], %s48
      %s51 = sshll.u32 [#allocation7], 4
      %s52 = int_to_ptr.vmem [resolvable:$true] %s51
      %54 = dma.hbm_to_vmem [thread:$0]  %s5, 48, %s52, [#allocation6]
    $region25: #{tpu_custom_call.1} parent=1 // pred_fallthru
      _
    // Predicated region
    $region26: #{tpu_custom_call.1} parent=1 // pred_check
      _
    $region27: #{tpu_custom_call.1} parent=1 // pred_check_branch
      %56 = sbr.rel (0) target = $region29
    $region28: #{tpu_custom_call.1} parent=1 // pred_region
      %s58 = ssub.s32 6144, 6144
      %59 = vsyncadd [#allocation9], %s58
      %s60 = sshll.u32 [#allocation8], 4
      %s61 = int_to_ptr.vmem [resolvable:$true] %s60
      %66 = dma.hbm_to_vmem [thread:$0]  %s6, 6144, %s61, [#allocation9], 384, 384, 24
    $region29: #{tpu_custom_call.1} parent=1 // pred_fallthru
      _
    // Predicated region
    $region30: #{tpu_custom_call.1} parent=1 // pred_check
      _
    $region31: #{tpu_custom_call.1} parent=1 // pred_check_branch
      %68 = sbr.rel (0) target = $region33
    $region32: #{tpu_custom_call.1} parent=1 // pred_region
      %s70 = ssub.s32 48, 48
      %71 = vsyncadd [#allocation9], %s70
      %s73 = sshll.u32 [#allocation10], 4
      %s74 = int_to_ptr.vmem [resolvable:$true] %s73
      %76 = dma.hbm_to_vmem [thread:$0]  %s7, 48, %s74, [#allocation9]
    $region33: #{tpu_custom_call.1} parent=1 // pred_fallthru
      _
    // Predicated region
    $region34: #{tpu_custom_call.1} parent=1 // pred_check
      _
    $region35: #{tpu_custom_call.1} parent=1 // pred_check_branch
      %78 = sbr.rel (0) target = $region37
    $region36: #{tpu_custom_call.1} parent=1 // pred_region
      %79 = dma.done [#allocation3], 128
    $region37: #{tpu_custom_call.1} parent=1 // pred_fallthru
      _
    // Predicated region
    $region38: #{tpu_custom_call.1} parent=1 // pred_check
      _
    $region39: #{tpu_custom_call.1} parent=1 // pred_check_branch
      %81 = sbr.rel (0) target = $region41
    $region40: #{tpu_custom_call.1} parent=1 // pred_region
      %82 = dma.done [#allocation6], 6144
    $region41: #{tpu_custom_call.1} parent=1 // pred_fallthru
      _
    // Predicated region
    $region42: #{tpu_custom_call.1} parent=1 // pred_check
      _
    $region43: #{tpu_custom_call.1} parent=1 // pred_check_branch
      %84 = sbr.rel (0) target = $region45
    $region44: #{tpu_custom_call.1} parent=1 // pred_region
      %85 = dma.done [#allocation6], 48
    $region45: #{tpu_custom_call.1} parent=1 // pred_fallthru
      _
    // Predicated region
    $region46: #{tpu_custom_call.1} parent=1 // pred_check
      _
    $region47: #{tpu_custom_call.1} parent=1 // pred_check_branch
      %87 = sbr.rel (0) target = $region49
    $region48: #{tpu_custom_call.1} parent=1 // pred_region
      %88 = dma.done [#allocation9], 6144
    $region49: #{tpu_custom_call.1} parent=1 // pred_fallthru
      _
    // Predicated region
    $region50: #{tpu_custom_call.1} parent=1 // pred_check
      _
    $region51: #{tpu_custom_call.1} parent=1 // pred_check_branch
      %90 = sbr.rel (0) target = $region53
    $region52: #{tpu_custom_call.1} parent=1 // pred_region
      %91 = dma.done [#allocation9], 48
    $region53: #{tpu_custom_call.1} parent=1 // pred_fallthru
      _
    %v92 = vld [vmem:[%s0] sm:$0xff]
    %v93 = vld [vmem:[#allocation2] sm:$0xff]
    %v94 = vld [vmem:[%s2] sm:$0xff]
    %v95 = vld [vmem:[%s2 + $0x8] sm:$0xff]
    %v96 = vld [vmem:[%s3] sm:$0x1]
    %v98 = vlaneseq
    %v99 = vshrl.u32 %v98, 7
    %v100 = vsub.s32 0, %v99
    %v101 = vrot.slane %v96, %v100
    %vm103 = vcmask 130048
    %v105 = vsel %vm103, %v92, 0
    %107 = vmatprep.subr.mxu0 0.0
    %108 = vmatpush1.msra.mxu0 %v94
    %109 = vmatprep.subr.mxu0 0.0
    %110 = vmatpush1.msra.mxu0 %v95
    %111 = vmatprep.subr.mxu0 0.0
    %112 = vmatpush1.msra.mxu0 0.0
    %113 = vmatprep.subr.mxu0 0.0
    %114 = vmatpush1.msra.mxu0 0.0
    %115 = vmatprep.subr.mxu0 0.0
    %116 = vmatpush1.msra.mxu0 0.0
    %117 = vmatprep.subr.mxu0 0.0
    %118 = vmatpush1.msra.mxu0 0.0
    %119 = vmatprep.subr.mxu0 0.0
    %120 = vmatpush1.msra.mxu0 0.0
    %121 = vmatprep.subr.mxu0 0.0
    %122 = vmatpush1.msra.mxu0 0.0
    %123 = vmatprep.subr.mxu0 0.0
    %124 = vmatpush1.msra.mxu0 0.0
    %125 = vmatprep.subr.mxu0 0.0
    %126 = vmatpush1.msra.mxu0 0.0
    %127 = vmatprep.subr.mxu0 0.0
    %128 = vmatpush1.msra.mxu0 0.0
    %129 = vmatprep.subr.mxu0 0.0
    %130 = vmatpush1.msra.mxu0 0.0
    %131 = vmatprep.subr.mxu0 0.0
    %132 = vmatpush1.msra.mxu0 0.0
    %133 = vmatprep.subr.mxu0 0.0
    %134 = vmatpush1.msra.mxu0 0.0
    %135 = vmatprep.subr.mxu0 0.0
    %136 = vmatpush1.msra.mxu0 0.0
    %137 = vmatprep.subr.mxu0 0.0
    %138 = vmatpush1.msra.mxu0 0.0
    %139 = vmatprep.subr.mxu0 0.0
    %140 = vmatpush1.msra.mxu0 0.0
    %141 = vmatprep.subr.mxu0 0.0
    %142 = vmatpush1.msra.mxu0 0.0
    %143 = vmatprep.subr.mxu0 0.0
    %144 = vmatpush1.msra.mxu0 0.0
    %145 = vmatprep.subr.mxu0 0.0
    %146 = vmatpush1.msra.mxu0 0.0
    %147 = vmatprep.subr.mxu0 0.0
    %148 = vmatpush1.msra.mxu0 0.0
    %149 = vmatprep.subr.mxu0 0.0
    %150 = vmatpush1.msra.mxu0 0.0
    %151 = vmatprep.subr.mxu0 0.0
    %152 = vmatpush1.msra.mxu0 0.0
    %153 = vmatprep.subr.mxu0 0.0
    %154 = vmatpush1.msra.mxu0 0.0
    %155 = vmatprep.subr.mxu0 0.0
    %156 = vmatpush1.msra.mxu0 0.0
    %157 = vmatprep.subr.mxu0 0.0
    %158 = vmatpush1.msra.mxu0 0.0
    %159 = vmatprep.subr.mxu0 0.0
    %160 = vmatpush1.msra.mxu0 0.0
    %161 = vmatprep.subr.mxu0 0.0
    %162 = vmatpush1.msra.mxu0 0.0
    %163 = vmatprep.subr.mxu0 0.0
    %164 = vmatpush1.msra.mxu0 0.0
    %165 = vmatprep.subr.mxu0 0.0
    %166 = vmatpush1.msra.mxu0 0.0
    %167 = vmatprep.subr.mxu0 0.0
    %168 = vmatpush1.msra.mxu0 0.0
    %169 = vmatprep.subr.mxu0 0.0
    %170 = vmatpush1.msra.mxu0 0.0
    %171 = vmatprep.mubr.f32.mxu0 0.0
    %172 = vmatmul.mubr.f32.gmra.mrb[0].mxu0 %v105
    %v173 = vpop.f32.mrb[0].mxu0
    %v174 = vadd.f32 %v101, %v173
    %v175 = vpop.f32.mrb[0].mxu0
    %176 = vdwg.mxu0
    %v177 = vmax.f32 %v174, 0.0
    %v178 = vld [vmem:[#allocation5] sm:$0xff]
    %v179 = vld [vmem:[#allocation5 + $0x8] sm:$0xff]
    %v180 = vld [vmem:[#allocation5 + $0x10] sm:$0xff]
    %v181 = vld [vmem:[#allocation5 + $0x18] sm:$0xff]
    %v182 = vld [vmem:[#allocation5 + $0x20] sm:$0xff]
    %v183 = vld [vmem:[#allocation5 + $0x28] sm:$0xff]
    %v184 = vld [vmem:[#allocation5 + $0x30] sm:$0xff]
    %v185 = vld [vmem:[#allocation5 + $0x38] sm:$0xff]
    %v186 = vld [vmem:[#allocation5 + $0x40] sm:$0xff]
    %v187 = vld [vmem:[#allocation5 + $0x48] sm:$0xff]
    %v188 = vld [vmem:[#allocation5 + $0x50] sm:$0xff]
    %v189 = vld [vmem:[#allocation5 + $0x58] sm:$0xff]
    %v190 = vld [vmem:[#allocation5 + $0x60] sm:$0xff]
    %v191 = vld [vmem:[#allocation5 + $0x68] sm:$0xff]
    %v192 = vld [vmem:[#allocation5 + $0x70] sm:$0xff]
    %v193 = vld [vmem:[#allocation5 + $0x78] sm:$0xff]
    %v194 = vld [vmem:[#allocation5 + $0x80] sm:$0xff]
    %v195 = vld [vmem:[#allocation5 + $0x88] sm:$0xff]
    %v196 = vld [vmem:[#allocation5 + $0x90] sm:$0xff]
    %v197 = vld [vmem:[#allocation5 + $0x98] sm:$0xff]
    %v198 = vld [vmem:[#allocation5 + $0xa0] sm:$0xff]
    %v199 = vld [vmem:[#allocation5 + $0xa8] sm:$0xff]
    %v200 = vld [vmem:[#allocation5 + $0xb0] sm:$0xff]
    %v201 = vld [vmem:[#allocation5 + $0xb8] sm:$0xff]
    %v202 = vld [vmem:[#allocation5 + $0xc0] sm:$0xff]
    %v203 = vld [vmem:[#allocation5 + $0xc8] sm:$0xff]
    %v204 = vld [vmem:[#allocation5 + $0xd0] sm:$0xff]
    %v205 = vld [vmem:[#allocation5 + $0xd8] sm:$0xff]
    %v206 = vld [vmem:[#allocation5 + $0xe0] sm:$0xff]
    %v207 = vld [vmem:[#allocation5 + $0xe8] sm:$0xff]
    %v208 = vld [vmem:[#allocation5 + $0xf0] sm:$0xff]
    %v209 = vld [vmem:[#allocation5 + $0xf8] sm:$0xff]
    %v210 = vld [vmem:[#allocation5 + $0x100] sm:$0xff]
    %v211 = vld [vmem:[#allocation5 + $0x108] sm:$0xff]
    %v212 = vld [vmem:[#allocation5 + $0x110] sm:$0xff]
    %v213 = vld [vmem:[#allocation5 + $0x118] sm:$0xff]
    %v214 = vld [vmem:[#allocation5 + $0x120] sm:$0xff]
    %v215 = vld [vmem:[#allocation5 + $0x128] sm:$0xff]
    %v216 = vld [vmem:[#allocation5 + $0x130] sm:$0xff]
    %v217 = vld [vmem:[#allocation5 + $0x138] sm:$0xff]
    %v218 = vld [vmem:[#allocation5 + $0x140] sm:$0xff]
    %v219 = vld [vmem:[#allocation5 + $0x148] sm:$0xff]
    %v220 = vld [vmem:[#allocation5 + $0x150] sm:$0xff]
    %v221 = vld [vmem:[#allocation5 + $0x158] sm:$0xff]
    %v222 = vld [vmem:[#allocation5 + $0x160] sm:$0xff]
    %v223 = vld [vmem:[#allocation5 + $0x168] sm:$0xff]
    %v224 = vld [vmem:[#allocation5 + $0x170] sm:$0xff]
    %v225 = vld [vmem:[#allocation5 + $0x178] sm:$0xff]
    %v226 = vld [vmem:[#allocation7] sm:$0x7]
    %v228 = vlaneseq
    %v229 = vshrl.u32 %v228, 7
    %v230 = vsub.s32 0, %v229
    %v231 = vrot.slane %v226, %v230
    %v232 = vlaneseq
    %v233 = vshrl.u32 %v232, 7
    %v234 = vsub.s32 1, %v233
    %v235 = vrot.slane %v226, %v234
    %v236 = vlaneseq
    %v237 = vshrl.u32 %v236, 7
    %v238 = vsub.s32 2, %v237
    %v239 = vrot.slane %v226, %v238
    %243 = vmatprep.subr.mxu0 %v179
    %244 = vmatpush1.msra.mxu0 %v178
    %245 = vmatprep.subr.mxu0 %v182
    %246 = vmatpush1.msra.mxu0 %v181
    %247 = vmatprep.subr.mxu0 %v185
    %248 = vmatpush1.msra.mxu0 %v184
    %249 = vmatprep.subr.mxu0 %v188
    %250 = vmatpush1.msra.mxu0 %v187
    %251 = vmatprep.subr.mxu0 %v191
    %252 = vmatpush1.msra.mxu0 %v190
    %253 = vmatprep.subr.mxu0 %v194
    %254 = vmatpush1.msra.mxu0 %v193
    %255 = vmatprep.subr.mxu0 %v197
    %256 = vmatpush1.msra.mxu0 %v196
    %257 = vmatprep.subr.mxu0 %v200
    %258 = vmatpush1.msra.mxu0 %v199
    %259 = vmatprep.subr.mxu0 %v203
    %260 = vmatpush1.msra.mxu0 %v202
    %261 = vmatprep.subr.mxu0 %v206
    %262 = vmatpush1.msra.mxu0 %v205
    %263 = vmatprep.subr.mxu0 %v209
    %264 = vmatpush1.msra.mxu0 %v208
    %265 = vmatprep.subr.mxu0 %v212
    %266 = vmatpush1.msra.mxu0 %v211
    %267 = vmatprep.subr.mxu0 %v215
    %268 = vmatpush1.msra.mxu0 %v214
    %269 = vmatprep.subr.mxu0 %v218
    %270 = vmatpush1.msra.mxu0 %v217
    %271 = vmatprep.subr.mxu0 %v221
    %272 = vmatpush1.msra.mxu0 %v220
    %273 = vmatprep.subr.mxu0 %v224
    %274 = vmatpush1.msra.mxu0 %v223
    %275 = vmatprep.subr.mxu0 0.0
    %276 = vmatpush1.msra.mxu0 0.0
    %277 = vmatprep.subr.mxu0 0.0
    %278 = vmatpush1.msra.mxu0 0.0
    %279 = vmatprep.subr.mxu0 0.0
    %280 = vmatpush1.msra.mxu0 0.0
    %281 = vmatprep.subr.mxu0 0.0
    %282 = vmatpush1.msra.mxu0 0.0
    %283 = vmatprep.subr.mxu0 0.0
    %284 = vmatpush1.msra.mxu0 0.0
    %285 = vmatprep.subr.mxu0 0.0
    %286 = vmatpush1.msra.mxu0 0.0
    %287 = vmatprep.subr.mxu0 0.0
    %288 = vmatpush1.msra.mxu0 0.0
    %289 = vmatprep.subr.mxu0 0.0
    %290 = vmatpush1.msra.mxu0 0.0
    %291 = vmatprep.subr.mxu0 0.0
    %292 = vmatpush1.msra.mxu0 0.0
    %293 = vmatprep.subr.mxu0 0.0
    %294 = vmatpush1.msra.mxu0 0.0
    %295 = vmatprep.subr.mxu0 0.0
    %296 = vmatpush1.msra.mxu0 0.0
    %297 = vmatprep.subr.mxu0 0.0
    %298 = vmatpush1.msra.mxu0 0.0
    %299 = vmatprep.subr.mxu0 0.0
    %300 = vmatpush1.msra.mxu0 0.0
    %301 = vmatprep.subr.mxu0 0.0
    %302 = vmatpush1.msra.mxu0 0.0
    %303 = vmatprep.subr.mxu0 0.0
    %304 = vmatpush1.msra.mxu0 0.0
    %305 = vmatprep.subr.mxu0 0.0
    %306 = vmatpush1.msra.mxu0 0.0
    %307 = vmatprep.mubr.f32.mxu0 0.0
    %308 = vmatmul.mubr.f32.gmra.mrb[0].mxu0 %v177
    %v309 = vpop.f32.mrb[0].mxu0
    %v310 = vadd.f32 %v231, %v309
    %v311 = vpop.f32.mrb[0].mxu0
    %v312 = vadd.f32 %v235, %v311
    %313 = vdwg.mxu0
    %314 = vmatprep.subr.mxu0 0.0
    %315 = vmatpush1.msra.mxu0 %v180
    %316 = vmatprep.subr.mxu0 0.0
    %317 = vmatpush1.msra.mxu0 %v183
    %318 = vmatprep.subr.mxu0 0.0
    %319 = vmatpush1.msra.mxu0 %v186
    %320 = vmatprep.subr.mxu0 0.0
    %321 = vmatpush1.msra.mxu0 %v189
    %322 = vmatprep.subr.mxu0 0.0
    %323 = vmatpush1.msra.mxu0 %v192
    %324 = vmatprep.subr.mxu0 0.0
    %325 = vmatpush1.msra.mxu0 %v195
    %326 = vmatprep.subr.mxu0 0.0
    %327 = vmatpush1.msra.mxu0 %v198
    %328 = vmatprep.subr.mxu0 0.0
    %329 = vmatpush1.msra.mxu0 %v201
    %330 = vmatprep.subr.mxu0 0.0
    %331 = vmatpush1.msra.mxu0 %v204
    %332 = vmatprep.subr.mxu0 0.0
    %333 = vmatpush1.msra.mxu0 %v207
    %334 = vmatprep.subr.mxu0 0.0
    %335 = vmatpush1.msra.mxu0 %v210
    %336 = vmatprep.subr.mxu0 0.0
    %337 = vmatpush1.msra.mxu0 %v213
    %338 = vmatprep.subr.mxu0 0.0
    %339 = vmatpush1.msra.mxu0 %v216
    %340 = vmatprep.subr.mxu0 0.0
    %341 = vmatpush1.msra.mxu0 %v219
    %342 = vmatprep.subr.mxu0 0.0
    %343 = vmatpush1.msra.mxu0 %v222
    %344 = vmatprep.subr.mxu0 0.0
    %345 = vmatpush1.msra.mxu0 %v225
    %346 = vmatprep.subr.mxu0 0.0
    %347 = vmatpush1.msra.mxu0 0.0
    %348 = vmatprep.subr.mxu0 0.0
    %349 = vmatpush1.msra.mxu0 0.0
    %350 = vmatprep.subr.mxu0 0.0
    %351 = vmatpush1.msra.mxu0 0.0
    %352 = vmatprep.subr.mxu0 0.0
    %353 = vmatpush1.msra.mxu0 0.0
    %354 = vmatprep.subr.mxu0 0.0
    %355 = vmatpush1.msra.mxu0 0.0
    %356 = vmatprep.subr.mxu0 0.0
    %357 = vmatpush1.msra.mxu0 0.0
    %358 = vmatprep.subr.mxu0 0.0
    %359 = vmatpush1.msra.mxu0 0.0
    %360 = vmatprep.subr.mxu0 0.0
    %361 = vmatpush1.msra.mxu0 0.0
    %362 = vmatprep.subr.mxu0 0.0
    %363 = vmatpush1.msra.mxu0 0.0
    %364 = vmatprep.subr.mxu0 0.0
    %365 = vmatpush1.msra.mxu0 0.0
    %366 = vmatprep.subr.mxu0 0.0
    %367 = vmatpush1.msra.mxu0 0.0
    %368 = vmatprep.subr.mxu0 0.0
    %369 = vmatpush1.msra.mxu0 0.0
    %370 = vmatprep.subr.mxu0 0.0
    %371 = vmatpush1.msra.mxu0 0.0
    %372 = vmatprep.subr.mxu0 0.0
    %373 = vmatpush1.msra.mxu0 0.0
    %374 = vmatprep.subr.mxu0 0.0
    %375 = vmatpush1.msra.mxu0 0.0
    %376 = vmatprep.subr.mxu0 0.0
    %377 = vmatpush1.msra.mxu0 0.0
    %378 = vmatprep.mubr.f32.mxu0 0.0
    %379 = vmatmul.mubr.f32.gmra.mrb[0].mxu0 %v177
    %v380 = vpop.f32.mrb[0].mxu0
    %v381 = vadd.f32 %v239, %v380
    %v382 = vpop.f32.mrb[0].mxu0
    %383 = vdwg.mxu0
    %v384 = vld [vmem:[#allocation8] sm:$0xff]
    %v385 = vld [vmem:[#allocation8 + $0x8] sm:$0xff]
    %v386 = vld [vmem:[#allocation8 + $0x10] sm:$0xff]
    %v387 = vld [vmem:[#allocation8 + $0x18] sm:$0xff]
    %v388 = vld [vmem:[#allocation8 + $0x20] sm:$0xff]
    %v389 = vld [vmem:[#allocation8 + $0x28] sm:$0xff]
    %v390 = vld [vmem:[#allocation8 + $0x30] sm:$0xff]
    %v391 = vld [vmem:[#allocation8 + $0x38] sm:$0xff]
    %v392 = vld [vmem:[#allocation8 + $0x40] sm:$0xff]
    %v393 = vld [vmem:[#allocation8 + $0x48] sm:$0xff]
    %v394 = vld [vmem:[#allocation8 + $0x50] sm:$0xff]
    %v395 = vld [vmem:[#allocation8 + $0x58] sm:$0xff]
    %v396 = vld [vmem:[#allocation8 + $0x60] sm:$0xff]
    %v397 = vld [vmem:[#allocation8 + $0x68] sm:$0xff]
    %v398 = vld [vmem:[#allocation8 + $0x70] sm:$0xff]
    %v399 = vld [vmem:[#allocation8 + $0x78] sm:$0xff]
    %v400 = vld [vmem:[#allocation8 + $0x80] sm:$0xff]
    %v401 = vld [vmem:[#allocation8 + $0x88] sm:$0xff]
    %v402 = vld [vmem:[#allocation8 + $0x90] sm:$0xff]
    %v403 = vld [vmem:[#allocation8 + $0x98] sm:$0xff]
    %v404 = vld [vmem:[#allocation8 + $0xa0] sm:$0xff]
    %v405 = vld [vmem:[#allocation8 + $0xa8] sm:$0xff]
    %v406 = vld [vmem:[#allocation8 + $0xb0] sm:$0xff]
    %v407 = vld [vmem:[#allocation8 + $0xb8] sm:$0xff]
    %v408 = vld [vmem:[#allocation8 + $0xc0] sm:$0xff]
    %v409 = vld [vmem:[#allocation8 + $0xc8] sm:$0xff]
    %v410 = vld [vmem:[#allocation8 + $0xd0] sm:$0xff]
    %v411 = vld [vmem:[#allocation8 + $0xd8] sm:$0xff]
    %v412 = vld [vmem:[#allocation8 + $0xe0] sm:$0xff]
    %v413 = vld [vmem:[#allocation8 + $0xe8] sm:$0xff]
    %v414 = vld [vmem:[#allocation8 + $0xf0] sm:$0xff]
    %v415 = vld [vmem:[#allocation8 + $0xf8] sm:$0xff]
    %v416 = vld [vmem:[#allocation8 + $0x100] sm:$0xff]
    %v417 = vld [vmem:[#allocation8 + $0x108] sm:$0xff]
    %v418 = vld [vmem:[#allocation8 + $0x110] sm:$0xff]
    %v419 = vld [vmem:[#allocation8 + $0x118] sm:$0xff]
    %v420 = vld [vmem:[#allocation8 + $0x120] sm:$0xff]
    %v421 = vld [vmem:[#allocation8 + $0x128] sm:$0xff]
    %v422 = vld [vmem:[#allocation8 + $0x130] sm:$0xff]
    %v423 = vld [vmem:[#allocation8 + $0x138] sm:$0xff]
    %v424 = vld [vmem:[#allocation8 + $0x140] sm:$0xff]
    %v425 = vld [vmem:[#allocation8 + $0x148] sm:$0xff]
    %v426 = vld [vmem:[#allocation8 + $0x150] sm:$0xff]
    %v427 = vld [vmem:[#allocation8 + $0x158] sm:$0xff]
    %v428 = vld [vmem:[#allocation8 + $0x160] sm:$0xff]
    %v429 = vld [vmem:[#allocation8 + $0x168] sm:$0xff]
    %v430 = vld [vmem:[#allocation8 + $0x170] sm:$0xff]
    %v431 = vld [vmem:[#allocation8 + $0x178] sm:$0xff]
    %v432 = vld [vmem:[#allocation10] sm:$0x7]
    %v434 = vlaneseq
    %v435 = vshrl.u32 %v434, 7
    %v436 = vsub.s32 0, %v435
    %v437 = vrot.slane %v432, %v436
    %v438 = vlaneseq
    %v439 = vshrl.u32 %v438, 7
    %v440 = vsub.s32 1, %v439
    %v441 = vrot.slane %v432, %v440
    %v442 = vlaneseq
    %v443 = vshrl.u32 %v442, 7
    %v444 = vsub.s32 2, %v443
    %v445 = vrot.slane %v432, %v444
    %449 = vmatprep.subr.mxu0 %v385
    %450 = vmatpush1.msra.mxu0 %v384
    %451 = vmatprep.subr.mxu0 %v388
    %452 = vmatpush1.msra.mxu0 %v387
    %453 = vmatprep.subr.mxu0 %v391
    %454 = vmatpush1.msra.mxu0 %v390
    %455 = vmatprep.subr.mxu0 %v394
    %456 = vmatpush1.msra.mxu0 %v393
    %457 = vmatprep.subr.mxu0 %v397
    %458 = vmatpush1.msra.mxu0 %v396
    %459 = vmatprep.subr.mxu0 %v400
    %460 = vmatpush1.msra.mxu0 %v399
    %461 = vmatprep.subr.mxu0 %v403
    %462 = vmatpush1.msra.mxu0 %v402
    %463 = vmatprep.subr.mxu0 %v406
    %464 = vmatpush1.msra.mxu0 %v405
    %465 = vmatprep.subr.mxu0 %v409
    %466 = vmatpush1.msra.mxu0 %v408
    %467 = vmatprep.subr.mxu0 %v412
    %468 = vmatpush1.msra.mxu0 %v411
    %469 = vmatprep.subr.mxu0 %v415
    %470 = vmatpush1.msra.mxu0 %v414
    %471 = vmatprep.subr.mxu0 %v418
    %472 = vmatpush1.msra.mxu0 %v417
    %473 = vmatprep.subr.mxu0 %v421
    %474 = vmatpush1.msra.mxu0 %v420
    %475 = vmatprep.subr.mxu0 %v424
    %476 = vmatpush1.msra.mxu0 %v423
    %477 = vmatprep.subr.mxu0 %v427
    %478 = vmatpush1.msra.mxu0 %v426
    %479 = vmatprep.subr.mxu0 %v430
    %480 = vmatpush1.msra.mxu0 %v429
    %481 = vmatprep.subr.mxu0 0.0
    %482 = vmatpush1.msra.mxu0 0.0
    %483 = vmatprep.subr.mxu0 0.0
    %484 = vmatpush1.msra.mxu0 0.0
    %485 = vmatprep.subr.mxu0 0.0
    %486 = vmatpush1.msra.mxu0 0.0
    %487 = vmatprep.subr.mxu0 0.0
    %488 = vmatpush1.msra.mxu0 0.0
    %489 = vmatprep.subr.mxu0 0.0
    %490 = vmatpush1.msra.mxu0 0.0
    %491 = vmatprep.subr.mxu0 0.0
    %492 = vmatpush1.msra.mxu0 0.0
    %493 = vmatprep.subr.mxu0 0.0
    %494 = vmatpush1.msra.mxu0 0.0
    %495 = vmatprep.subr.mxu0 0.0
    %496 = vmatpush1.msra.mxu0 0.0
    %497 = vmatprep.subr.mxu0 0.0
    %498 = vmatpush1.msra.mxu0 0.0
    %499 = vmatprep.subr.mxu0 0.0
    %500 = vmatpush1.msra.mxu0 0.0
    %501 = vmatprep.subr.mxu0 0.0
    %502 = vmatpush1.msra.mxu0 0.0
    %503 = vmatprep.subr.mxu0 0.0
    %504 = vmatpush1.msra.mxu0 0.0
    %505 = vmatprep.subr.mxu0 0.0
    %506 = vmatpush1.msra.mxu0 0.0
    %507 = vmatprep.subr.mxu0 0.0
    %508 = vmatpush1.msra.mxu0 0.0
    %509 = vmatprep.subr.mxu0 0.0
    %510 = vmatpush1.msra.mxu0 0.0
    %511 = vmatprep.subr.mxu0 0.0
    %512 = vmatpush1.msra.mxu0 0.0
    %513 = vmatprep.mubr.f32.mxu0 0.0
    %514 = vmatmul.mubr.f32.gmra.mrb[0].mxu0 %v93
    %v515 = vpop.f32.mrb[0].mxu0
    %v516 = vadd.f32 %v437, %v515
    %v517 = vpop.f32.mrb[0].mxu0
    %v518 = vadd.f32 %v441, %v517
    %519 = vdwg.mxu0
    %520 = vmatprep.subr.mxu0 0.0
    %521 = vmatpush1.msra.mxu0 %v386
    %522 = vmatprep.subr.mxu0 0.0
    %523 = vmatpush1.msra.mxu0 %v389
    %524 = vmatprep.subr.mxu0 0.0
    %525 = vmatpush1.msra.mxu0 %v392
    %526 = vmatprep.subr.mxu0 0.0
    %527 = vmatpush1.msra.mxu0 %v395
    %528 = vmatprep.subr.mxu0 0.0
    %529 = vmatpush1.msra.mxu0 %v398
    %530 = vmatprep.subr.mxu0 0.0
    %531 = vmatpush1.msra.mxu0 %v401
    %532 = vmatprep.subr.mxu0 0.0
    %533 = vmatpush1.msra.mxu0 %v404
    %534 = vmatprep.subr.mxu0 0.0
    %535 = vmatpush1.msra.mxu0 %v407
    %536 = vmatprep.subr.mxu0 0.0
    %537 = vmatpush1.msra.mxu0 %v410
    %538 = vmatprep.subr.mxu0 0.0
    %539 = vmatpush1.msra.mxu0 %v413
    %540 = vmatprep.subr.mxu0 0.0
    %541 = vmatpush1.msra.mxu0 %v416
    %542 = vmatprep.subr.mxu0 0.0
    %543 = vmatpush1.msra.mxu0 %v419
    %544 = vmatprep.subr.mxu0 0.0
    %545 = vmatpush1.msra.mxu0 %v422
    %546 = vmatprep.subr.mxu0 0.0
    %547 = vmatpush1.msra.mxu0 %v425
    %548 = vmatprep.subr.mxu0 0.0
    %549 = vmatpush1.msra.mxu0 %v428
    %550 = vmatprep.subr.mxu0 0.0
    %551 = vmatpush1.msra.mxu0 %v431
    %552 = vmatprep.subr.mxu0 0.0
    %553 = vmatpush1.msra.mxu0 0.0
    %554 = vmatprep.subr.mxu0 0.0
    %555 = vmatpush1.msra.mxu0 0.0
    %556 = vmatprep.subr.mxu0 0.0
    %557 = vmatpush1.msra.mxu0 0.0
    %558 = vmatprep.subr.mxu0 0.0
    %559 = vmatpush1.msra.mxu0 0.0
    %560 = vmatprep.subr.mxu0 0.0
    %561 = vmatpush1.msra.mxu0 0.0
    %562 = vmatprep.subr.mxu0 0.0
    %563 = vmatpush1.msra.mxu0 0.0
    %564 = vmatprep.subr.mxu0 0.0
    %565 = vmatpush1.msra.mxu0 0.0
    %566 = vmatprep.subr.mxu0 0.0
    %567 = vmatpush1.msra.mxu0 0.0
    %568 = vmatprep.subr.mxu0 0.0
    %569 = vmatpush1.msra.mxu0 0.0
    %570 = vmatprep.subr.mxu0 0.0
    %571 = vmatpush1.msra.mxu0 0.0
    %572 = vmatprep.subr.mxu0 0.0
    %573 = vmatpush1.msra.mxu0 0.0
    %574 = vmatprep.subr.mxu0 0.0
    %575 = vmatpush1.msra.mxu0 0.0
    %576 = vmatprep.subr.mxu0 0.0
    %577 = vmatpush1.msra.mxu0 0.0
    %578 = vmatprep.subr.mxu0 0.0
    %579 = vmatpush1.msra.mxu0 0.0
    %580 = vmatprep.subr.mxu0 0.0
    %581 = vmatpush1.msra.mxu0 0.0
    %582 = vmatprep.subr.mxu0 0.0
    %583 = vmatpush1.msra.mxu0 0.0
    %584 = vmatprep.mubr.f32.mxu0 0.0
    %585 = vmatmul.mubr.f32.gmra.mrb[0].mxu0 %v93
    %v586 = vpop.f32.mrb[0].mxu0
    %v587 = vadd.f32 %v445, %v586
    %v588 = vpop.f32.mrb[0].mxu0
    %589 = vdwg.mxu0
    %v590 = vadd.f32 %v310, %v516
    %v591 = vmul.f32 %v590, 0.5
    %v592 = vtanh.pop %v591
    %v593 = vadd.f32 %v592, 1.0
    %v594 = vmul.f32 %v593, 0.5
    %v595 = vadd.f32 %v312, %v518
    %v596 = vmul.f32 %v595, 0.5
    %v597 = vtanh.pop %v596
    %v598 = vadd.f32 %v597, 1.0
    %v599 = vmul.f32 %v598, 0.5
    %v600 = vmul.f32 %v594, %v587
    %v601 = vadd.f32 %v381, %v600
    %v602 = vtanh.pop %v601
    %v603 = vsub.f32 %v93, %v602
    %v604 = vmul.f32 %v599, %v603
    %v605 = vadd.f32 %v602, %v604
    %606 = vst [vmem:[#allocation11] sm:$0xff] %v605
    // Predicated region
    $region54: #{tpu_custom_call.1} parent=1 // pred_check
      _
    $region55: #{tpu_custom_call.1} parent=1 // pred_check_branch
      %608 = sbr.rel (0) target = $region57
    $region56: #{tpu_custom_call.1} parent=1 // pred_region
      %s610 = ssub.s32 128, 128
      %611 = vsyncadd [#allocation4], %s610
      %s613 = sshll.u32 [#allocation11], 4
      %s614 = int_to_ptr.vmem [resolvable:$true] %s613
      %616 = dma.vmem_to_hbm [thread:$0]  %s614, 128, %s8, [#allocation4]
    $region57: #{tpu_custom_call.1} parent=1 // pred_fallthru
      _
    // Predicated region
    $region58: #{tpu_custom_call.1} parent=1 // pred_check
      _
    $region59: #{tpu_custom_call.1} parent=1 // pred_check_branch
      %618 = sbr.rel (0) target = $region61
    $region60: #{tpu_custom_call.1} parent=1 // pred_region
      %619 = dma.done [#allocation4], 128
    $region61: #{tpu_custom_call.1} parent=1 // pred_fallthru
      _
    %620 = vsyncpa [#allocation3], 1
    %621 = vsyncpa [#allocation6], 1
    %622 = vsyncpa [#allocation9], 1
    %623 = vsyncpa [#allocation4], 1

</llo_original>
